<compile_context>
chip_gen: v7x
topology: tpu7x:2x2x1
jax: 0.10.0
libtpu: 0.0.40
codegen_flags: <defaults>
</compile_context>

<pallas_src>
import jax
import jax.numpy as jnp
from jax import lax
from jax.experimental import pallas as pl
from jax.experimental.pallas import tpu as pltpu


def _round_up(a: int, b: int) -> int:
    return -(-a // b) * b


def _linear_kernel(x_ref, w_ref, b_ref, o_ref):
    # x_ref: (TM, F) bf16   flattened-input batch tile
    # w_ref: (O,  F) bf16   weight in native nn.Linear layout (no transpose)
    # b_ref: (1,  O) f32    bias
    # o_ref: (TM, O) f32    output tile
    acc = lax.dot_general(
        x_ref[...], w_ref[...],
        dimension_numbers=(((1,), (1,)), ((), ())),   # contract F with F -> (TM, O)
        preferred_element_type=jnp.float32,           # f32 accumulation on the MXU
    )
    o_ref[...] = (acc + b_ref[...]).astype(o_ref.dtype)  # epilogue stays f32


def prepare_params(weight, bias):
    """One-time parameter prep (outside the per-call path).

    weight: (O, F) f32 in PyTorch nn.Linear layout -> bf16, same layout.
    bias:   (O,)   f32 -> (1, O) f32 for the in-kernel broadcast add.
    """
    w_bf16 = weight.astype(jnp.bfloat16)
    b_f32 = bias.reshape(1, -1).astype(jnp.float32)
    return w_bf16, b_f32


def model_forward(x_nchw, w_bf16, b_f32, *, tm=None):
    """Equivalent of nn.Sequential(nn.Flatten(), nn.Linear(F, O))(x).

    x_nchw : (N, C, H, W) float
    w_bf16 : (O, F) bfloat16  (from prepare_params)
    b_f32  : (1, O) float32   (from prepare_params)
    returns: (N, O) float32
    """
    n = x_nchw.shape[0]
    o, f = w_bf16.shape

    # Flatten like nn.Flatten (row-major over C,H,W) and cast MXU operand to bf16.
    x_flat = x_nchw.reshape(n, f).astype(jnp.bfloat16)

    # Batch tile: 8-aligned (sublane), capped at 256 (MXU-friendly height on
    # v6e/v7x). Pad the batch up to a multiple of the tile and slice back.
    if tm is None:
        tm = min(256, _round_up(n, 8))
    n_pad = _round_up(n, tm)
    if n_pad != n:
        x_flat = jnp.pad(x_flat, ((0, n_pad - n), (0, 0)))

    grid = (n_pad // tm,)

    out = pl.pallas_call(
        _linear_kernel,
        out_shape=jax.ShapeDtypeStruct((n_pad, o), jnp.float32),
        grid_spec=pltpu.PrefetchScalarGridSpec(
            num_scalar_prefetch=0,
            grid=grid,
            in_specs=[
                pl.BlockSpec((tm, f), lambda i: (i, 0)),  # x tile marches over batch
                pl.BlockSpec((o, f), lambda i: (0, 0)),   # full weight, resident
                pl.BlockSpec((1, o), lambda i: (0, 0)),   # full bias, resident
            ],
            out_specs=pl.BlockSpec((tm, o), lambda i: (i, 0)),
        ),
        compiler_params=pltpu.CompilerParams(
            # Batch tiles are independent -> shard across v7x's 2 TensorCores.
            dimension_semantics=("parallel",),
        ),
    )(x_flat, w_bf16, b_f32)

    return out[:n] if n_pad != n else out


if __name__ == "__main__":
    # Small shapes consistent with the module: batch=8, C=1, H=W=16
    # -> in_features = 1*16*16 = 256, out_features = 128.
    N, C, H, W = 8, 1, 16, 16
    F = C * H * W
    O = 128

    key = jax.random.PRNGKey(0)
    kx, kw, kb = jax.random.split(key, 3)

    x = jax.random.normal(kx, (N, C, H, W), dtype=jnp.float32)
    # Deterministic "Linear" parameter init (Kaiming-uniform-ish bound like PyTorch).
    bound = 1.0 / jnp.sqrt(F)
    weight = jax.random.uniform(kw, (O, F), minval=-bound, maxval=bound,
                                dtype=jnp.float32)
    bias = jax.random.uniform(kb, (O,), minval=-bound, maxval=bound,
                              dtype=jnp.float32)

    # One-time parameter prep (bf16 weight, f32 bias) — not in the per-call path.
    w_bf16, b_f32 = prepare_params(weight, bias)

    y = model_forward(x, w_bf16, b_f32)
    y = jax.block_until_ready(y)

    # Reference check against plain f32 JAX (same math as nn.Flatten + nn.Linear).
    # bf16 MXU operands => loosen tolerance vs. the full-f32 reference.
    y_ref = x.reshape(N, F) @ weight.T + bias
    assert y.shape == (N, O)
    assert y.dtype == jnp.float32
    assert jnp.allclose(y, y_ref, atol=5e-2, rtol=5e-2)

    print("KERNEL_OK")
</pallas_src>

<mosaic_0001>
module attributes {stable_mosaic.version = 11 : i64} {
  func.func @_linear_kernel(%arg0: i32, %arg1: memref<8x256xbf16, #tpu.memory_space<vmem>>, %arg2: memref<128x256xbf16, #tpu.memory_space<vmem>>, %arg3: memref<1x128xf32, #tpu.memory_space<vmem>>, %arg4: memref<8x128xf32, #tpu.memory_space<vmem>>) attributes {dimension_semantics = [#tpu.dimension_semantics<parallel>], iteration_bounds = array<i64: 1>, scalar_prefetch = 0 : i64, scratch_operands = 0 : i64, tpu.core_type = #tpu.core_type<tc>, window_params = [{transform_indices = @transform_0, window_bounds = array<i64: 8, 256>}, {pipeline_mode = #tpu.pipeline_mode<synchronous>, transform_indices = @transform_1, window_bounds = array<i64: 128, 256>}, {pipeline_mode = #tpu.pipeline_mode<synchronous>, transform_indices = @transform_2, window_bounds = array<i64: 1, 128>}, {transform_indices = @transform_3, window_bounds = array<i64: 8, 128>}]} {
    %c0 = arith.constant 0 : index
    %c0_0 = arith.constant 0 : index
    %0 = vector.load %arg1[%c0, %c0_0] : memref<8x256xbf16, #tpu.memory_space<vmem>>, vector<8x256xbf16>
    %c0_1 = arith.constant 0 : index
    %c0_2 = arith.constant 0 : index
    %1 = vector.load %arg2[%c0_1, %c0_2] : memref<128x256xbf16, #tpu.memory_space<vmem>>, vector<128x256xbf16>
    %cst = arith.constant dense<0.000000e+00> : vector<8x128xf32>
    %2 = tpu.matmul %0, %1, %cst {dimension_numbers = #tpu.dot_dimension_numbers<[1], [1], [0], [0], [0, 0, 1, 0], [], []>} : vector<8x256xbf16>, vector<128x256xbf16>, vector<8x128xf32> -> vector<8x128xf32>
    %c0_3 = arith.constant 0 : index
    %c0_4 = arith.constant 0 : index
    %3 = vector.load %arg3[%c0_3, %c0_4] : memref<1x128xf32, #tpu.memory_space<vmem>>, vector<1x128xf32>
    %4 = vector.broadcast %3 : vector<1x128xf32> to vector<8x128xf32>
    %5 = arith.addf %2, %4 : vector<8x128xf32>
    %c0_5 = arith.constant 0 : index
    %c0_6 = arith.constant 0 : index
    %6 = vector.load %arg4[%c0_5, %c0_6] : memref<8x128xf32, #tpu.memory_space<vmem>>, vector<8x128xf32>
    tpu.vector_store %arg4[%c0_5, %c0_6], %5 {strides = array<i32>} : memref<8x128xf32, #tpu.memory_space<vmem>>, vector<8x128xf32>,
    return
  }
  func.func @transform_0(%arg0: i32) -> (i32, i32) {
    %c0_i32 = arith.constant 0 : i32
    %c0_i32_0 = arith.constant 0 : i32
    return %arg0, %c0_i32 : i32, i32
  }
  func.func @transform_1(%arg0: i32) -> (i32, i32) {
    %c0_i32 = arith.constant 0 : i32
    %c0_i32_0 = arith.constant 0 : i32
    %c0_i32_1 = arith.constant 0 : i32
    return %c0_i32, %c0_i32_0 : i32, i32
  }
  func.func @transform_2(%arg0: i32) -> (i32, i32) {
    %c0_i32 = arith.constant 0 : i32
    %c0_i32_0 = arith.constant 0 : i32
    %c0_i32_1 = arith.constant 0 : i32
    return %c0_i32, %c0_i32_0 : i32, i32
  }
  func.func @transform_3(%arg0: i32) -> (i32, i32) {
    %c0_i32 = arith.constant 0 : i32
    %c0_i32_0 = arith.constant 0 : i32
    return %arg0, %c0_i32 : i32, i32
  }
}

</mosaic_0001>

<llo_original>
// kernel: tpu_custom_call.1
$region0: #{tpu_custom_call.1}
  #allocation0 [shape = 'u32[]', space=smem, size = 0x4, offset = 0x4, fixed_abs, tag = 'smem constant byte address 0x4 - core index']
  #allocation1 [shape = 'u32[144,128]{1,0:T(1,128)}', space=vmem, size = 0x12000, scoped, tag = 'internal scratch']
  %s0 = inlined_call_operand.hbm [shape: bf16[8,256], index: 0, kind: input, shape index: {}]
  %s1 = inlined_call_operand.hbm [shape: bf16[128,256], index: 1, kind: input, shape index: {}]
  %s2 = inlined_call_operand.vmem [shape: f32[1,128], index: 2, kind: input, shape index: {}]
  %s3 = inlined_call_operand.hbm [shape: f32[8,128], index: 3, kind: output, shape index: {}]
  %s4 = sld [smem:[#allocation0]]
  $region30: #{tpu_custom_call.1} parent=0
    _
  %s6 = ssub.s32 1, %s4
  %s7 = scalar_select 0, %s6, %s4
  $region1: #{tpu_custom_call.1} parent=0
    #allocation2 [shape = 'u8[4096]{0}', space=vmem, size = 0x1000, scoped, tag = 'input window, operand 0, single buffered']
    #allocation3 [shape = 's32[1]{0}', space=sflag, size = 0x4, scoped, tag = 'scoped memory for tpu_custom_call.1']
    #allocation4 [shape = 's32[1]{0}', space=sflag, size = 0x4, scoped, tag = 'scoped memory for tpu_custom_call.1']
    #allocation5 [shape = 'u8[65536]{0}', space=vmem, size = 0x10000, scoped, tag = 'input window, operand 1, single buffered']
    #allocation6 [shape = 's32[1]{0}', space=sflag, size = 0x4, scoped, tag = 'scoped memory for tpu_custom_call.1']
    #allocation7 [shape = 'u8[4096]{0}', space=vmem, size = 0x1000, scoped, tag = 'output window, operand 0, single buffered']
    %8 = vsyncpa [#allocation3], 0
    %9 = vsyncpa [#allocation6], 0
    %10 = vsyncpa [#allocation4], 0
    // Predicated region
    $region2: #{tpu_custom_call.1} parent=1 // pred_check
      _
    $region3: #{tpu_custom_call.1} parent=1 // pred_check_branch
      %12 = sbr.rel (0) target = $region5
    $region4: #{tpu_custom_call.1} parent=1 // pred_region
      %s14 = ssub.s32 128, 128
      %15 = vsyncadd [#allocation3], %s14
      %s17 = sshll.u32 [#allocation2], 4
      %s18 = int_to_ptr.vmem [resolvable:$true] %s17
      %20 = dma.hbm_to_vmem [thread:$0]  %s0, 128, %s18, [#allocation3]
    $region5: #{tpu_custom_call.1} parent=1 // pred_fallthru
      _
    // Predicated region
    $region6: #{tpu_custom_call.1} parent=1 // pred_check
      _
    $region7: #{tpu_custom_call.1} parent=1 // pred_check_branch
      %22 = sbr.rel (0) target = $region9
    $region8: #{tpu_custom_call.1} parent=1 // pred_region
      %s24 = ssub.s32 2048, 2048
      %25 = vsyncadd [#allocation6], %s24
      %s26 = sshll.u32 [#allocation5], 4
      %s27 = int_to_ptr.vmem [resolvable:$true] %s26
      %32 = dma.hbm_to_vmem [thread:$0]  %s1, 2048, %s27, [#allocation6], 128, 128, 8
    $region9: #{tpu_custom_call.1} parent=1 // pred_fallthru
      _
    // Predicated region
    $region10: #{tpu_custom_call.1} parent=1 // pred_check
      _
    $region11: #{tpu_custom_call.1} parent=1 // pred_check_branch
      %34 = sbr.rel (0) target = $region13
    $region12: #{tpu_custom_call.1} parent=1 // pred_region
      _
    $region13: #{tpu_custom_call.1} parent=1 // pred_fallthru
      _
    // Predicated region
    $region14: #{tpu_custom_call.1} parent=1 // pred_check
      _
    $region15: #{tpu_custom_call.1} parent=1 // pred_check_branch
      %36 = sbr.rel (0) target = $region17
    $region16: #{tpu_custom_call.1} parent=1 // pred_region
      %37 = dma.done [#allocation3], 128
    $region17: #{tpu_custom_call.1} parent=1 // pred_fallthru
      _
    // Predicated region
    $region18: #{tpu_custom_call.1} parent=1 // pred_check
      _
    $region19: #{tpu_custom_call.1} parent=1 // pred_check_branch
      %39 = sbr.rel (0) target = $region21
    $region20: #{tpu_custom_call.1} parent=1 // pred_region
      %40 = dma.done [#allocation6], 2048
    $region21: #{tpu_custom_call.1} parent=1 // pred_fallthru
      _
    %v42 = vld [vmem:[#allocation2] sm:$0xff]
    %v43 = vld [vmem:[#allocation5] sm:$0xff]
    %v44 = vld [vmem:[#allocation5 + $0x8] sm:$0xff]
    %v45 = vld [vmem:[#allocation5 + $0x10] sm:$0xff]
    %v46 = vld [vmem:[#allocation5 + $0x18] sm:$0xff]
    %v47 = vld [vmem:[#allocation5 + $0x20] sm:$0xff]
    %v48 = vld [vmem:[#allocation5 + $0x28] sm:$0xff]
    %v49 = vld [vmem:[#allocation5 + $0x30] sm:$0xff]
    %v50 = vld [vmem:[#allocation5 + $0x38] sm:$0xff]
    %v51 = vld [vmem:[#allocation5 + $0x40] sm:$0xff]
    %v52 = vld [vmem:[#allocation5 + $0x48] sm:$0xff]
    %v53 = vld [vmem:[#allocation5 + $0x50] sm:$0xff]
    %v54 = vld [vmem:[#allocation5 + $0x58] sm:$0xff]
    %v55 = vld [vmem:[#allocation5 + $0x60] sm:$0xff]
    %v56 = vld [vmem:[#allocation5 + $0x68] sm:$0xff]
    %v57 = vld [vmem:[#allocation5 + $0x70] sm:$0xff]
    %v58 = vld [vmem:[#allocation5 + $0x78] sm:$0xff]
    %v59 = vld [vmem:[%s2] sm:$0x1]
    %v61 = vlaneseq
    %v62 = vshrl.u32 %v61, 7
    %v63 = vsub.s32 0, %v62
    %v64 = vrot.slane %v59, %v63
    %v67 = vunpack.c.l.b16 %v42
    %v68 = vunpack.c.h.b16 %v42
    %v69 = vpack.c.b16 %v67, %v67
    %v70 = vpack.c.b16 %v68, %v68
    %v89 = vunpack.c.l.b16 %v43
    %v90 = vunpack.c.h.b16 %v43
    %v91 = vunpack.c.l.b16 %v44
    %v92 = vunpack.c.h.b16 %v44
    %v93 = vunpack.c.l.b16 %v45
    %v94 = vunpack.c.h.b16 %v45
    %v95 = vunpack.c.l.b16 %v46
    %v96 = vunpack.c.h.b16 %v46
    %v97 = vunpack.c.l.b16 %v47
    %v98 = vunpack.c.h.b16 %v47
    %v99 = vunpack.c.l.b16 %v48
    %v100 = vunpack.c.h.b16 %v48
    %v101 = vunpack.c.l.b16 %v49
    %v102 = vunpack.c.h.b16 %v49
    %v103 = vunpack.c.l.b16 %v50
    %v104 = vunpack.c.h.b16 %v50
    %v105 = vunpack.c.l.b16 %v51
    %v106 = vunpack.c.h.b16 %v51
    %v107 = vunpack.c.l.b16 %v52
    %v108 = vunpack.c.h.b16 %v52
    %v109 = vunpack.c.l.b16 %v53
    %v110 = vunpack.c.h.b16 %v53
    %v111 = vunpack.c.l.b16 %v54
    %v112 = vunpack.c.h.b16 %v54
    %v113 = vunpack.c.l.b16 %v55
    %v114 = vunpack.c.h.b16 %v55
    %v115 = vunpack.c.l.b16 %v56
    %v116 = vunpack.c.h.b16 %v56
    %v117 = vunpack.c.l.b16 %v57
    %v118 = vunpack.c.h.b16 %v57
    %v119 = vunpack.c.l.b16 %v58
    %v120 = vunpack.c.h.b16 %v58
    %v121 = vpack.c.b16 %v91, %v89
    %v122 = vpack.c.b16 %v92, %v90
    %v123 = vpack.c.b16 %v95, %v93
    %v124 = vpack.c.b16 %v96, %v94
    %v125 = vpack.c.b16 %v99, %v97
    %v126 = vpack.c.b16 %v100, %v98
    %v127 = vpack.c.b16 %v103, %v101
    %v128 = vpack.c.b16 %v104, %v102
    %v129 = vpack.c.b16 %v107, %v105
    %v130 = vpack.c.b16 %v108, %v106
    %v131 = vpack.c.b16 %v111, %v109
    %v132 = vpack.c.b16 %v112, %v110
    %v133 = vpack.c.b16 %v115, %v113
    %v134 = vpack.c.b16 %v116, %v114
    %v135 = vpack.c.b16 %v119, %v117
    %v136 = vpack.c.b16 %v120, %v118
    %153 = vmatprep.subr.bf16.mxu0 %v122
    %154 = vmatpush1.bf16.xpose.msra.mxu0 %v121
    %155 = vmatprep.subr.bf16.mxu0 %v124
    %156 = vmatpush1.bf16.xpose.msra.mxu0 %v123
    %157 = vmatprep.subr.bf16.mxu0 %v126
    %158 = vmatpush1.bf16.xpose.msra.mxu0 %v125
    %159 = vmatprep.subr.bf16.mxu0 %v128
    %160 = vmatpush1.bf16.xpose.msra.mxu0 %v127
    %161 = vmatprep.subr.bf16.mxu0 %v130
    %162 = vmatpush1.bf16.xpose.msra.mxu0 %v129
    %163 = vmatprep.subr.bf16.mxu0 %v132
    %164 = vmatpush1.bf16.xpose.msra.mxu0 %v131
    %165 = vmatprep.subr.bf16.mxu0 %v134
    %166 = vmatpush1.bf16.xpose.msra.mxu0 %v133
    %167 = vmatprep.subr.bf16.mxu0 %v136
    %168 = vmatpush1.bf16.xpose.msra.mxu0 %v135
    %169 = vmatprep.subr.bf16.mxu0 0
    %170 = vmatpush1.bf16.xpose.msra.mxu0 0
    %171 = vmatprep.subr.bf16.mxu0 0
    %172 = vmatpush1.bf16.xpose.msra.mxu0 0
    %173 = vmatprep.subr.bf16.mxu0 0
    %174 = vmatpush1.bf16.xpose.msra.mxu0 0
    %175 = vmatprep.subr.bf16.mxu0 0
    %176 = vmatpush1.bf16.xpose.msra.mxu0 0
    %177 = vmatprep.subr.bf16.mxu0 0
    %178 = vmatpush1.bf16.xpose.msra.mxu0 0
    %179 = vmatprep.subr.bf16.mxu0 0
    %180 = vmatpush1.bf16.xpose.msra.mxu0 0
    %181 = vmatprep.subr.bf16.mxu0 0
    %182 = vmatpush1.bf16.xpose.msra.mxu0 0
    %183 = vmatprep.subr.bf16.mxu0 0
    %184 = vmatpush1.bf16.xpose.msra.mxu0 0
    %185 = vmatprep.mubr.bf16.mxu0 %v70
    %186 = vmatmul.mubr.bf16.gmra.mrb[0].mxu0 %v69
    %v187 = vpop.f32.mrb[0].mxu0
    %v188 = vadd.f32 %v64, %v187
    %v189 = vpop.f32.mrb[0].mxu0
    %v190 = vpop.f32.mrb[0].mxu0
    %v191 = vpop.f32.mrb[0].mxu0
    %192 = vdwg.mxu0
    %193 = vst [vmem:[#allocation7] sm:$0xff] %v188
    // Predicated region
    $region22: #{tpu_custom_call.1} parent=1 // pred_check
      _
    $region23: #{tpu_custom_call.1} parent=1 // pred_check_branch
      %195 = sbr.rel (0) target = $region25
    $region24: #{tpu_custom_call.1} parent=1 // pred_region
      %s197 = ssub.s32 128, 128
      %198 = vsyncadd [#allocation4], %s197
      %s200 = sshll.u32 [#allocation7], 4
      %s201 = int_to_ptr.vmem [resolvable:$true] %s200
      %203 = dma.vmem_to_hbm [thread:$0]  %s201, 128, %s3, [#allocation4]
    $region25: #{tpu_custom_call.1} parent=1 // pred_fallthru
      _
    // Predicated region
    $region26: #{tpu_custom_call.1} parent=1 // pred_check
      _
    $region27: #{tpu_custom_call.1} parent=1 // pred_check_branch
      %205 = sbr.rel (0) target = $region29
    $region28: #{tpu_custom_call.1} parent=1 // pred_region
      %206 = dma.done [#allocation4], 128
    $region29: #{tpu_custom_call.1} parent=1 // pred_fallthru
      _
    %207 = vsyncpa [#allocation3], 1
    %208 = vsyncpa [#allocation6], 1
    %209 = vsyncpa [#allocation4], 1

</llo_original>
